<compile_context>
chip_gen: v6e
topology: v6e:2x2x1
jax: 0.10.0
libtpu: 0.0.40
codegen_flags: <defaults>
</compile_context>

<pallas_src>
import functools

import jax
import jax.numpy as jnp
from jax.experimental import pallas as pl
from jax.experimental.pallas import tpu as pltpu


def _yolo_head_kernel(whscale_ref, grid_ref, feat_ref,
                      feat_out_ref, dec_out_ref, dec_scratch,
                      *, num_anchors, box_ch, inv_s):
    """Decode one (AC, TILE_S2) spatial strip of one batch element.

    whscale_ref : VMEM (2A, 1)    f32  [aw0/S, ah0/S, aw1/S, ah1/S, ...]
    grid_ref    : VMEM (2, T)     f32  row 0 = gx (p % S), row 1 = gy (p // S)
    feat_ref    : VMEM (1, AC, T) f32  raw head logits (channel-major, lane-dense spatial)
    feat_out_ref: VMEM (1, T, AC) f32  raw logits in (S2, AC) layout (== the permute)
    dec_out_ref : VMEM (1, T, AC) f32  decoded boxes, same layout
    dec_scratch : VMEM (AC, T)    f32  decode staging buffer (channel-major)
    """
    f = feat_ref[0]                                   # (AC, T)
    sig = jax.nn.sigmoid(f)                           # EUP, whole tile
    dec_scratch[...] = sig                            # conf/class rows done as-is
    gxy = grid_ref[...]                               # (2, T): [gx; gy]
    ws = whscale_ref[...]                             # (2A, 1)

    for a in range(num_anchors):                      # static unroll, A is small
        r = a * box_ch
        # xy rows: (sigmoid(dx, dy) + grid) / S
        dec_scratch[r:r + 2, :] = (sig[r:r + 2, :] + gxy) * inv_s
        # wh rows: exp(dw, dh) * anchor / S   (exp restricted to these 2 rows)
        dec_scratch[r + 2:r + 4, :] = (jnp.exp(f[r + 2:r + 4, :])
                                       * ws[2 * a:2 * a + 2, :])

    # Fused permute: (AC, T) -> (T, AC) is exactly the
    # (B,A,C,S,S) -> (B,S,S,A,C) layout change for this spatial strip (XLU work,
    # otherwise idle in this kernel).
    feat_out_ref[0] = f.T
    dec_out_ref[0] = dec_scratch[...].T


def _choose_spatial_tile(s2, target_lanes=2048):
    """Largest lane-dense tile (multiple of 128) dividing S*S, capped at target."""
    if s2 <= target_lanes:
        return s2
    t = (target_lanes // 128) * 128
    while t >= 128:
        if s2 % t == 0:
            return t
        t -= 128
    return s2   # no lane-dense divisor; fall back to the whole spatial plane


def yolo_head_forward(x, anchors_per_feat, stride, num_bbparas, num_classes,
                      inference=False):
    """JAX/Pallas equivalent of YOLO_head.forward.

    x: (B, A*C, S, S) float32 feature map (NCHW, as produced by the conv net).
    Returns (feature, feature_de), both (B, S, S, A, C) when inference=False.
    """
    assert num_bbparas == 4, "decode assumes 4 bbox params (dx, dy, dw, dh)"
    B, CH, S, S_w = x.shape
    assert S == S_w
    A = int(anchors_per_feat.shape[0])
    C = num_bbparas + 1 + num_classes
    assert CH == A * C
    AC = A * C
    S2 = S * S

    x = x.astype(jnp.float32)
    feat_flat = x.reshape(B, AC, S2)

    # ---- Tiny auxiliary constants (no full-size planes). ----
    # Exact integer-iota grid offsets: p = row*S + col.
    p = jnp.arange(S2, dtype=jnp.int32)
    gx = (p % S).astype(jnp.float32)                   # column j  (channel 0)
    gy = (p // S).astype(jnp.float32)                  # row    i  (channel 1)
    grid_xy = jnp.stack([gx, gy], axis=0)              # (2, S2)

    # Per-anchor wh scales: anchor / stride / S, interleaved [w0, h0, w1, h1, ...]
    whscale = (jnp.asarray(anchors_per_feat, jnp.float32)
               / jnp.float32(stride) / jnp.float32(S)).reshape(2 * A, 1)

    tile = _choose_spatial_tile(S2)
    n_tiles = S2 // tile

    kernel = functools.partial(_yolo_head_kernel, num_anchors=A, box_ch=C,
                               inv_s=1.0 / float(S))

    feat_t, dec_t = pl.pallas_call(
        kernel,
        out_shape=(jax.ShapeDtypeStruct((B, S2, AC), jnp.float32),
                   jax.ShapeDtypeStruct((B, S2, AC), jnp.float32)),
        grid=(B, n_tiles),
        in_specs=[
            pl.BlockSpec((2 * A, 1), lambda b, s: (0, 0)),    # anchor scales
            pl.BlockSpec((2, tile), lambda b, s: (0, s)),     # gx/gy strip
            pl.BlockSpec((1, AC, tile), lambda b, s: (b, 0, s)),
        ],
        out_specs=(
            pl.BlockSpec((1, tile, AC), lambda b, s: (b, s, 0)),
            pl.BlockSpec((1, tile, AC), lambda b, s: (b, s, 0)),
        ),
        scratch_shapes=[pltpu.VMEM((AC, tile), jnp.float32)],
        compiler_params=pltpu.CompilerParams(
            dimension_semantics=("parallel", "parallel")),
    )(whscale, grid_xy, feat_flat)

    # (B, S2, AC) is bit-identical to (B, S, S, A, C); the reshape is layout-free.
    feature = feat_t.reshape(B, S, S, A, C)
    feature_de = dec_t.reshape(B, S, S, A, C)

    if inference:
        if B == 1:
            feature_de = feature_de.reshape(-1, C)
        else:
            feature_de = feature_de.reshape(B, -1, C)
    return feature, feature_de


def _reference_decode(x, anchors_per_feat, stride, num_bbparas, num_classes):
    """Pure-JAX port of YOLO_head.decoding_normal (for verification only)."""
    B, CH, S, _ = x.shape
    A = anchors_per_feat.shape[0]
    C = num_bbparas + 1 + num_classes
    feat = x.reshape(B, A, C, S, S).transpose(0, 3, 4, 1, 2)    # (B,S,S,A,C)
    anchors = (anchors_per_feat / stride).astype(jnp.float32)   # (A, 2)

    raw_dxy = feat[..., 0:2]
    raw_dwh = feat[..., 2:4]
    raw_rest = feat[..., 4:]

    grid_x = jnp.tile(jnp.arange(S)[None, :], (S, 1))
    grid_y = grid_x.T
    grid_xy = jnp.stack([grid_x, grid_y], axis=-1).astype(jnp.float32)
    grid_xy = grid_xy[None, :, :, None, :]                       # (1,S,S,1,2)

    pred_xy = (jax.nn.sigmoid(raw_dxy) + grid_xy) / S
    pred_wh = jnp.exp(raw_dwh) * anchors[None, None, None, :, :] / S
    pred_rest = jax.nn.sigmoid(raw_rest)
    return feat, jnp.concatenate([pred_xy, pred_wh, pred_rest], axis=-1)


if __name__ == "__main__":
    # Small, deterministic configuration consistent with the module.
    batch_size = 2
    num_classes = 3
    num_bbparas = 4
    stride = 8.0
    S = 16
    anchors_per_feat = jnp.array([[10.0, 13.0],
                                  [16.0, 30.0],
                                  [33.0, 23.0]], dtype=jnp.float32)
    A = anchors_per_feat.shape[0]
    C = num_bbparas + 1 + num_classes     # 8

    key = jax.random.PRNGKey(0)
    x = jax.random.normal(key, (batch_size, A * C, S, S), dtype=jnp.float32)

    feature, feature_de = yolo_head_forward(
        x, anchors_per_feat, stride, num_bbparas, num_classes, inference=False)
    jax.block_until_ready((feature, feature_de))

    # Sanity check against a pure-JAX reference of the PyTorch forward.
    ref_feat, ref_de = _reference_decode(
        x, anchors_per_feat, stride, num_bbparas, num_classes)
    assert feature.shape == (batch_size, S, S, A, C)
    assert feature_de.shape == (batch_size, S, S, A, C)
    assert jnp.allclose(feature, ref_feat)
    assert jnp.allclose(feature_de, ref_de, atol=1e-5, rtol=1e-5)

    print("KERNEL_OK")
</pallas_src>

<mosaic_0001>
module attributes {stable_mosaic.version = 11 : i64} {
  func.func @_yolo_head_kernel(%arg0: i32, %arg1: i32, %arg2: memref<6x1xf32, #tpu.memory_space<vmem>>, %arg3: memref<2x256xf32, #tpu.memory_space<vmem>>, %arg4: memref<1x24x256xf32, #tpu.memory_space<vmem>>, %arg5: memref<1x256x24xf32, #tpu.memory_space<vmem>>, %arg6: memref<1x256x24xf32, #tpu.memory_space<vmem>>, %arg7: memref<24x256xf32, #tpu.memory_space<vmem>>) attributes {dimension_semantics = [#tpu.dimension_semantics<parallel>, #tpu.dimension_semantics<parallel>], iteration_bounds = array<i64: 2, 1>, scalar_prefetch = 0 : i64, scratch_operands = 1 : i64, tpu.core_type = #tpu.core_type<tc>, window_params = [{pipeline_mode = #tpu.pipeline_mode<synchronous>, transform_indices = @transform_0, window_bounds = array<i64: 6, 1>}, {transform_indices = @transform_1, window_bounds = array<i64: 2, 256>}, {transform_indices = @transform_2, window_bounds = array<i64: 1, 24, 256>}, {transform_indices = @transform_3, window_bounds = array<i64: 1, 256, 24>}, {transform_indices = @transform_4, window_bounds = array<i64: 1, 256, 24>}]} {
    %c0 = arith.constant 0 : index
    %c0_0 = arith.constant 0 : index
    %c0_1 = arith.constant 0 : index
    %0 = vector.load %arg4[%c0, %c0_0, %c0_1] : memref<1x24x256xf32, #tpu.memory_space<vmem>>, vector<1x24x256xf32>
    %1 = vector.shape_cast %0 : vector<1x24x256xf32> to vector<24x256xf32>
    %2 = arith.negf %1 : vector<24x256xf32>
    %3 = math.exp %2 : vector<24x256xf32>
    %cst = arith.constant 1.000000e+00 : f32
    %4 = vector.broadcast %cst : f32 to vector<24x256xf32>
    %5 = arith.addf %4, %3 : vector<24x256xf32>
    %6 = arith.divf %4, %5 : vector<24x256xf32>
    %c0_2 = arith.constant 0 : index
    %c0_3 = arith.constant 0 : index
    %7 = vector.load %arg7[%c0_2, %c0_3] : memref<24x256xf32, #tpu.memory_space<vmem>>, vector<24x256xf32>
    tpu.vector_store %arg7[%c0_2, %c0_3], %6 {strides = array<i32>} : memref<24x256xf32, #tpu.memory_space<vmem>>, vector<24x256xf32>,
    %c0_4 = arith.constant 0 : index
    %c0_5 = arith.constant 0 : index
    %8 = vector.load %arg3[%c0_4, %c0_5] : memref<2x256xf32, #tpu.memory_space<vmem>>, vector<2x256xf32>
    %c0_6 = arith.constant 0 : index
    %c0_7 = arith.constant 0 : index
    %9 = vector.load %arg2[%c0_6, %c0_7] : memref<6x1xf32, #tpu.memory_space<vmem>>, vector<6x1xf32>
    %10 = vector.extract_strided_slice %6 {offsets = [0, 0], sizes = [2, 256], strides = [1, 1]} : vector<24x256xf32> to vector<2x256xf32>
    %11 = arith.addf %10, %8 : vector<2x256xf32>
    %cst_8 = arith.constant 6.250000e-02 : f32
    %12 = vector.broadcast %cst_8 : f32 to vector<2x256xf32>
    %13 = arith.mulf %11, %12 : vector<2x256xf32>
    %c0_9 = arith.constant 0 : index
    %c0_10 = arith.constant 0 : index
    %14 = vector.load %arg7[%c0_9, %c0_10] : memref<24x256xf32, #tpu.memory_space<vmem>>, vector<2x256xf32>
    tpu.vector_store %arg7[%c0_9, %c0_10], %13 {strides = array<i32>} : memref<24x256xf32, #tpu.memory_space<vmem>>, vector<2x256xf32>,
    %15 = vector.extract_strided_slice %1 {offsets = [2, 0], sizes = [2, 256], strides = [1, 1]} : vector<24x256xf32> to vector<2x256xf32>
    %16 = math.exp %15 : vector<2x256xf32>
    %17 = vector.extract_strided_slice %9 {offsets = [0, 0], sizes = [2, 1], strides = [1, 1]} : vector<6x1xf32> to vector<2x1xf32>
    %18 = vector.broadcast %17 : vector<2x1xf32> to vector<2x256xf32>
    %19 = arith.mulf %16, %18 : vector<2x256xf32>
    %c2 = arith.constant 2 : index
    %c0_11 = arith.constant 0 : index
    %20 = vector.load %arg7[%c2, %c0_11] : memref<24x256xf32, #tpu.memory_space<vmem>>, vector<2x256xf32>
    tpu.vector_store %arg7[%c2, %c0_11], %19 {strides = array<i32>} : memref<24x256xf32, #tpu.memory_space<vmem>>, vector<2x256xf32>,
    %21 = vector.extract_strided_slice %6 {offsets = [8, 0], sizes = [2, 256], strides = [1, 1]} : vector<24x256xf32> to vector<2x256xf32>
    %22 = arith.addf %21, %8 : vector<2x256xf32>
    %cst_12 = arith.constant 6.250000e-02 : f32
    %23 = vector.broadcast %cst_12 : f32 to vector<2x256xf32>
    %24 = arith.mulf %22, %23 : vector<2x256xf32>
    %c8 = arith.constant 8 : index
    %c0_13 = arith.constant 0 : index
    %25 = vector.load %arg7[%c8, %c0_13] : memref<24x256xf32, #tpu.memory_space<vmem>>, vector<2x256xf32>
    tpu.vector_store %arg7[%c8, %c0_13], %24 {strides = array<i32>} : memref<24x256xf32, #tpu.memory_space<vmem>>, vector<2x256xf32>,
    %26 = vector.extract_strided_slice %1 {offsets = [10, 0], sizes = [2, 256], strides = [1, 1]} : vector<24x256xf32> to vector<2x256xf32>
    %27 = math.exp %26 : vector<2x256xf32>
    %28 = vector.extract_strided_slice %9 {offsets = [2, 0], sizes = [2, 1], strides = [1, 1]} : vector<6x1xf32> to vector<2x1xf32>
    %29 = vector.broadcast %28 : vector<2x1xf32> to vector<2x256xf32>
    %30 = arith.mulf %27, %29 : vector<2x256xf32>
    %c10 = arith.constant 10 : index
    %c0_14 = arith.constant 0 : index
    %31 = vector.load %arg7[%c10, %c0_14] : memref<24x256xf32, #tpu.memory_space<vmem>>, vector<2x256xf32>
    tpu.vector_store %arg7[%c10, %c0_14], %30 {strides = array<i32>} : memref<24x256xf32, #tpu.memory_space<vmem>>, vector<2x256xf32>,
    %32 = vector.extract_strided_slice %6 {offsets = [16, 0], sizes = [2, 256], strides = [1, 1]} : vector<24x256xf32> to vector<2x256xf32>
    %33 = arith.addf %32, %8 : vector<2x256xf32>
    %cst_15 = arith.constant 6.250000e-02 : f32
    %34 = vector.broadcast %cst_15 : f32 to vector<2x256xf32>
    %35 = arith.mulf %33, %34 : vector<2x256xf32>
    %c16 = arith.constant 16 : index
    %c0_16 = arith.constant 0 : index
    %36 = vector.load %arg7[%c16, %c0_16] : memref<24x256xf32, #tpu.memory_space<vmem>>, vector<2x256xf32>
    tpu.vector_store %arg7[%c16, %c0_16], %35 {strides = array<i32>} : memref<24x256xf32, #tpu.memory_space<vmem>>, vector<2x256xf32>,
    %37 = vector.extract_strided_slice %1 {offsets = [18, 0], sizes = [2, 256], strides = [1, 1]} : vector<24x256xf32> to vector<2x256xf32>
    %38 = math.exp %37 : vector<2x256xf32>
    %39 = vector.extract_strided_slice %9 {offsets = [4, 0], sizes = [2, 1], strides = [1, 1]} : vector<6x1xf32> to vector<2x1xf32>
    %40 = vector.broadcast %39 : vector<2x1xf32> to vector<2x256xf32>
    %41 = arith.mulf %38, %40 : vector<2x256xf32>
    %c18 = arith.constant 18 : index
    %c0_17 = arith.constant 0 : index
    %42 = vector.load %arg7[%c18, %c0_17] : memref<24x256xf32, #tpu.memory_space<vmem>>, vector<2x256xf32>
    tpu.vector_store %arg7[%c18, %c0_17], %41 {strides = array<i32>} : memref<24x256xf32, #tpu.memory_space<vmem>>, vector<2x256xf32>,
    %43 = tpu.transpose %1, [1, 0] : vector<24x256xf32> -> vector<256x24xf32>
    %c0_18 = arith.constant 0 : index
    %c0_19 = arith.constant 0 : index
    %c0_20 = arith.constant 0 : index
    %44 = vector.load %arg5[%c0_18, %c0_19, %c0_20] : memref<1x256x24xf32, #tpu.memory_space<vmem>>, vector<1x256x24xf32>
    %45 = vector.shape_cast %44 : vector<1x256x24xf32> to vector<256x24xf32>
    %46 = vector.shape_cast %43 : vector<256x24xf32> to vector<1x256x24xf32>
    tpu.vector_store %arg5[%c0_18, %c0_19, %c0_20], %46 {strides = array<i32>} : memref<1x256x24xf32, #tpu.memory_space<vmem>>, vector<1x256x24xf32>,
    %c0_21 = arith.constant 0 : index
    %c0_22 = arith.constant 0 : index
    %47 = vector.load %arg7[%c0_21, %c0_22] : memref<24x256xf32, #tpu.memory_space<vmem>>, vector<24x256xf32>
    %48 = tpu.transpose %47, [1, 0] : vector<24x256xf32> -> vector<256x24xf32>
    %c0_23 = arith.constant 0 : index
    %c0_24 = arith.constant 0 : index
    %c0_25 = arith.constant 0 : index
    %49 = vector.load %arg6[%c0_23, %c0_24, %c0_25] : memref<1x256x24xf32, #tpu.memory_space<vmem>>, vector<1x256x24xf32>
    %50 = vector.shape_cast %49 : vector<1x256x24xf32> to vector<256x24xf32>
    %51 = vector.shape_cast %48 : vector<256x24xf32> to vector<1x256x24xf32>
    tpu.vector_store %arg6[%c0_23, %c0_24, %c0_25], %51 {strides = array<i32>} : memref<1x256x24xf32, #tpu.memory_space<vmem>>, vector<1x256x24xf32>,
    return
  }
  func.func @transform_0(%arg0: i32, %arg1: i32) -> (i32, i32) {
    %c0_i32 = arith.constant 0 : i32
    %c0_i32_0 = arith.constant 0 : i32
    %c0_i32_1 = arith.constant 0 : i32
    return %c0_i32, %c0_i32_0 : i32, i32
  }
  func.func @transform_1(%arg0: i32, %arg1: i32) -> (i32, i32) {
    %c0_i32 = arith.constant 0 : i32
    %c0_i32_0 = arith.constant 0 : i32
    return %c0_i32, %arg1 : i32, i32
  }
  func.func @transform_2(%arg0: i32, %arg1: i32) -> (i32, i32, i32) {
    %c0_i32 = arith.constant 0 : i32
    %c0_i32_0 = arith.constant 0 : i32
    return %arg0, %c0_i32, %arg1 : i32, i32, i32
  }
  func.func @transform_3(%arg0: i32, %arg1: i32) -> (i32, i32, i32) {
    %c0_i32 = arith.constant 0 : i32
    %c0_i32_0 = arith.constant 0 : i32
    return %arg0, %arg1, %c0_i32 : i32, i32, i32
  }
  func.func @transform_4(%arg0: i32, %arg1: i32) -> (i32, i32, i32) {
    %c0_i32 = arith.constant 0 : i32
    %c0_i32_0 = arith.constant 0 : i32
    return %arg0, %arg1, %c0_i32 : i32, i32, i32
  }
}

</mosaic_0001>

<llo_original>
// kernel: tpu_custom_call.1
$region0: #{tpu_custom_call.1}
  #allocation0 [shape = 'u32[]', space=smem, size = 0x4, offset = 0x4, fixed_abs, tag = 'smem constant byte address 0x4 - core index']
  #allocation1 [shape = 'u32[144,128]{1,0:T(1,128)}', space=vmem, size = 0x12000, scoped, tag = 'internal scratch']
  #allocation2 [shape = 'f32[24,256]{1,0:T(8,128)}', space=vmem, size = 0x6000, scoped, tag = 'scratch operand']
  %s0 = inlined_call_operand.vmem [shape: f32[6,1], index: 0, kind: input, shape index: {}]
  %s1 = inlined_call_operand.vmem [shape: f32[2,256], index: 1, kind: input, shape index: {}]
  %s2 = inlined_call_operand.hbm [shape: f32[2,24,256], index: 2, kind: input, shape index: {}]
  %s3 = inlined_call_operand.vmem [shape: f32[2,256,24], index: 3, kind: output, shape index: {0}]
  %s4 = inlined_call_operand.vmem [shape: f32[2,256,24], index: 4, kind: output, shape index: {1}]
  %5 = xla_tuple %s3, %s4
  %s6 = sld [smem:[#allocation0]]
  $region57: #{tpu_custom_call.1} parent=0
    _
  %s8 = ssub.s32 1, %s6
  %s9 = scalar_select 0, %s8, %s6
  $region1: #{tpu_custom_call.1} parent=0
    #allocation3 [shape = 'u8[49152]{0}', space=vmem, size = 0xc000, scoped, tag = 'input window, operand 2']
    #allocation4 [shape = 's32[2]{0}', space=sflag, size = 0x8, scoped, tag = 'scoped memory for tpu_custom_call.1']
    %10 = vsyncpa [#allocation4], 0
    %s11 = scalar_lea.sflag [#allocation4], 1
    %12 = vsyncpa %s11, 0
    loop: start=0, step=1, limit=4
    $region2: #{tpu_custom_call.1} parent=1 // loop_pre_header
      _
    $region3: #{tpu_custom_call.1} parent=1 // loop_header
      %s14 = sphi 0, %s18
      %p15 = scmp.ge.s32.totalorder %s14, 4
      %s21 = sphi 0, %s33
      %s22 = sphi 0, %s29
      %s23 = sphi 0, %s21
      %s24 = sphi 0, %s22
      %s25 = sphi 0, %s23
      %s26 = sphi 0, %s24
      %s34 = sphi 0, %s34
      %s36 = sphi 0, %s34
      %s37 = sphi 0, %s36
      %s51 = sphi 0, %s37
      %s57 = sphi 0, %s59
      %s60 = sphi 0, %s57
      %s61 = sphi 0, %s60
      %s77 = sphi 0, %s61
      %s85 = sphi 0, %s87
      %s88 = sphi 0, %s85
      %s89 = sphi 0, %s88
      %s105 = sphi 0, %s89
      %s113 = sphi 0, %s115
      %s116 = sphi 0, %s113
      %s117 = sphi 0, %s116
      %s133 = sphi 0, %s117
      %s141 = sphi 0, %s143
      %s144 = sphi 0, %s141
      %s145 = sphi 0, %s144
      %s161 = sphi 0, %s145
    $region4: #{tpu_custom_call.1} parent=1 // loop_header_branch
      %17 = sbr.rel (%p15) target = $region8
    $region5: #{tpu_custom_call.1} parent=1 // loop_body
      %s19 = ssub.s32 %s14, 1
      %s20 = ssub.s32 %s14, 2
      %s27 = sadd.s32 1, %s22
      %p28 = scmp.ge.s32.totalorder %s27, 1
      %s29 = scalar_select %p28, 0, %s27
      %s30 = sadd.s32 1, %s21
      %s31 = scalar_select %p28, %s30, %s21
      %p32 = scmp.ge.s32.totalorder %s31, 2
      %s33 = scalar_select %p32, 0, %s31
      %s35 = sadd.s32 %s34, 1
      %p38 = scmp.eq.s32.totalorder %s14, 1
      %p39 = scmp.ne.s32.totalorder %s34, %s36
      %p40 = scmp.eq.s32.totalorder %s14, 0
      %p41 = por %p39, %p40
      %p42 = scmp.ne.s32.totalorder %s34, %s36
      %p43 = scmp.eq.s32.totalorder %s19, 1
      %p44 = por %p42, %p43
      %p45 = scmp.ne.s32.totalorder %s36, %s37
      %p46 = scmp.eq.s32.totalorder %s19, 0
      %p47 = por %p45, %p46
      %p48 = scmp.ne.s32.totalorder %s36, %s37
      %p49 = scmp.eq.s32.totalorder %s20, 1
      %p50 = por %p48, %p49
      %p52 = scmp.ne.s32.totalorder %s37, %s51
      %p53 = scmp.eq.s32.totalorder %s20, 0
      %p54 = por %p52, %p53
      %s55 = ssub.s32 %s22, %s29
      %p56 = scmp.eq.s32.totalorder %s55, 0
      %s58 = sadd.s32 %s57, 1
      %s59 = scalar_select %p56, %s57, %s58
      %p62 = pneg %p56
      %p63 = scmp.eq.s32.totalorder %s14, 1
      %p64 = por %p62, %p63
      %p65 = scmp.ne.s32.totalorder %s57, %s60
      %p66 = scmp.eq.s32.totalorder %s14, 0
      %p67 = por %p65, %p66
      %p68 = scmp.ne.s32.totalorder %s57, %s60
      %p69 = scmp.eq.s32.totalorder %s19, 1
      %p70 = por %p68, %p69
      %p71 = scmp.ne.s32.totalorder %s60, %s61
      %p72 = scmp.eq.s32.totalorder %s19, 0
      %p73 = por %p71, %p72
      %p74 = scmp.ne.s32.totalorder %s60, %s61
      %p75 = scmp.eq.s32.totalorder %s20, 1
      %p76 = por %p74, %p75
      %p78 = scmp.ne.s32.totalorder %s61, %s77
      %p79 = scmp.eq.s32.totalorder %s20, 0
      %p80 = por %p78, %p79
      %s81 = ssub.s32 %s21, %s33
      %s82 = ssub.s32 %s22, %s29
      %s83 = sor.u32 %s81, %s82
      %p84 = scmp.eq.s32.totalorder %s83, 0
      %s86 = sadd.s32 %s85, 1
      %s87 = scalar_select %p84, %s85, %s86
      %p90 = pneg %p84
      %p91 = scmp.eq.s32.totalorder %s14, 1
      %p92 = por %p90, %p91
      %p93 = scmp.ne.s32.totalorder %s85, %s88
      %p94 = scmp.eq.s32.totalorder %s14, 0
      %p95 = por %p93, %p94
      %p96 = scmp.ne.s32.totalorder %s85, %s88
      %p97 = scmp.eq.s32.totalorder %s19, 1
      %p98 = por %p96, %p97
      %p99 = scmp.ne.s32.totalorder %s88, %s89
      %p100 = scmp.eq.s32.totalorder %s19, 0
      %p101 = por %p99, %p100
      %p102 = scmp.ne.s32.totalorder %s88, %s89
      %p103 = scmp.eq.s32.totalorder %s20, 1
      %p104 = por %p102, %p103
      %p106 = scmp.ne.s32.totalorder %s89, %s105
      %p107 = scmp.eq.s32.totalorder %s20, 0
      %p108 = por %p106, %p107
      %s109 = ssub.s32 %s21, %s33
      %s110 = ssub.s32 %s22, %s29
      %s111 = sor.u32 %s109, %s110
      %p112 = scmp.eq.s32.totalorder %s111, 0
      %s114 = sadd.s32 %s113, 1
      %s115 = scalar_select %p112, %s113, %s114
      %p118 = pneg %p112
      %p119 = scmp.eq.s32.totalorder %s14, 1
      %p120 = por %p118, %p119
      %p121 = scmp.ne.s32.totalorder %s113, %s116
      %p122 = scmp.eq.s32.totalorder %s14, 0
      %p123 = por %p121, %p122
      %p124 = scmp.ne.s32.totalorder %s113, %s116
      %p125 = scmp.eq.s32.totalorder %s19, 1
      %p126 = por %p124, %p125
      %p127 = scmp.ne.s32.totalorder %s116, %s117
      %p128 = scmp.eq.s32.totalorder %s19, 0
      %p129 = por %p127, %p128
      %p130 = scmp.ne.s32.totalorder %s116, %s117
      %p131 = scmp.eq.s32.totalorder %s20, 1
      %p132 = por %p130, %p131
      %p134 = scmp.ne.s32.totalorder %s117, %s133
      %p135 = scmp.eq.s32.totalorder %s20, 0
      %p136 = por %p134, %p135
      %s137 = ssub.s32 %s21, %s33
      %s138 = ssub.s32 %s22, %s29
      %s139 = sor.u32 %s137, %s138
      %p140 = scmp.eq.s32.totalorder %s139, 0
      %s142 = sadd.s32 %s141, 1
      %s143 = scalar_select %p140, %s141, %s142
      %p146 = pneg %p140
      %p147 = scmp.eq.s32.totalorder %s14, 1
      %p148 = por %p146, %p147
      %p149 = scmp.ne.s32.totalorder %s141, %s144
      %p150 = scmp.eq.s32.totalorder %s14, 0
      %p151 = por %p149, %p150
      %p152 = scmp.ne.s32.totalorder %s141, %s144
      %p153 = scmp.eq.s32.totalorder %s19, 1
      %p154 = por %p152, %p153
      %p155 = scmp.ne.s32.totalorder %s144, %s145
      %p156 = scmp.eq.s32.totalorder %s19, 0
      %p157 = por %p155, %p156
      %p158 = scmp.ne.s32.totalorder %s144, %s145
      %p159 = scmp.eq.s32.totalorder %s20, 1
      %p160 = por %p158, %p159
      %p162 = scmp.ne.s32.totalorder %s145, %s161
      %p163 = scmp.eq.s32.totalorder %s20, 0
      %p164 = por %p162, %p163
      %p165 = scmp.le.s32.totalorder 1, %s14
      %p166 = scmp.lt.s32.totalorder %s14, 3
      %p167 = pnand %p165, %p166
      %p168 = pneg %p167
      // Predicated region
      $region9: #{tpu_custom_call.1} parent=5 // pred_check
        _
      $region10: #{tpu_custom_call.1} parent=5 // pred_check_branch
        %170 = sbr.rel (%p167) target = $region12
      $region11: #{tpu_custom_call.1} parent=5 // pred_region
        %s171 = ssub.s32 %s14, 1
        // Predicated region
        $region13: #{tpu_custom_call.1} parent=11 // pred_check
          %p172 = pneg %p47
        $region14: #{tpu_custom_call.1} parent=11 // pred_check_branch
          %174 = sbr.rel (%p172) target = $region16
        $region15: #{tpu_custom_call.1} parent=11 // pred_region
          _
        $region16: #{tpu_custom_call.1} parent=11 // pred_fallthru
          _
        // Predicated region
        $region17: #{tpu_custom_call.1} parent=11 // pred_check
          %p175 = pneg %p73
        $region18: #{tpu_custom_call.1} parent=11 // pred_check_branch
          %177 = sbr.rel (%p175) target = $region20
        $region19: #{tpu_custom_call.1} parent=11 // pred_region
          %s178 = smul.u32 2, %s24
          %p179 = scmp.lt.s32.totalorder %s178, 1
          %s180 = scalar_select %p179, %s178, 1
          %s181 = smul.addr %s180, 2
          %s182 = scalar_lea.vmem %s1, %s181
          %s183 = smul.u32 2, %s24
        $region20: #{tpu_custom_call.1} parent=11 // pred_fallthru
          _
      $region12: #{tpu_custom_call.1} parent=5 // pred_fallthru
        _
      %p184 = scmp.lt.s32.totalorder %s14, 2
      // Predicated region
      $region21: #{tpu_custom_call.1} parent=5 // pred_check
        %p185 = pneg %p184
      $region22: #{tpu_custom_call.1} parent=5 // pred_check_branch
        %187 = sbr.rel (%p185) target = $region24
      $region23: #{tpu_custom_call.1} parent=5 // pred_region
        // Predicated region
        $region25: #{tpu_custom_call.1} parent=23 // pred_check
          %p188 = pneg %p95
        $region26: #{tpu_custom_call.1} parent=23 // pred_check_branch
          %190 = sbr.rel (%p188) target = $region28
        $region27: #{tpu_custom_call.1} parent=23 // pred_region
          %s191 = sand.u32 %s85, 1
          %s192 = scalar_lea.sflag [#allocation4], %s191
          %s193 = sand.u32 %s85, 1
          %s194 = smul.addr %s193, 48
          %s195 = scalar_lea.vmem [#allocation3], %s194
          %s196 = smul.u32 2, %s22
          %s198 = ssub.s32 768, 768
          %199 = vsyncadd %s192, %s198
          %s200 = smul.addr %s21, 6
          %s201 = sadd.s32 %s196, %s200
          %s202 = smul.addr %s201, 128
          %s203 = scalar_lea.hbm %s2, %s202
          %s204 = sshll.u32 %s195, 4
          %s205 = int_to_ptr.vmem [resolvable:$true] %s204
          %210 = dma.hbm_to_vmem [thread:$0]  %s203, 768, %s205, %s192, 256, 256, 16
        $region28: #{tpu_custom_call.1} parent=23 // pred_fallthru
          _
      $region24: #{tpu_custom_call.1} parent=5 // pred_fallthru
        _
      %p211 = scmp.le.s32.totalorder 1, %s14
      %p212 = scmp.lt.s32.totalorder %s14, 3
      %p213 = pnand %p211, %p212
      %p214 = pneg %p213
      // Predicated region
      $region29: #{tpu_custom_call.1} parent=5 // pred_check
        _
      $region30: #{tpu_custom_call.1} parent=5 // pred_check_branch
        %216 = sbr.rel (%p213) target = $region32
      $region31: #{tpu_custom_call.1} parent=5 // pred_region
        %s217 = ssub.s32 %s14, 1
        %s218 = sand.u32 %s88, 1
        %s219 = scalar_lea.sflag [#allocation4], %s218
        %s220 = sand.u32 %s88, 1
        %s221 = smul.addr %s220, 48
        %s222 = scalar_lea.vmem [#allocation3], %s221
        // Predicated region
        $region33: #{tpu_custom_call.1} parent=31 // pred_check
          %p223 = pneg %p101
        $region34: #{tpu_custom_call.1} parent=31 // pred_check_branch
          %225 = sbr.rel (%p223) target = $region36
        $region35: #{tpu_custom_call.1} parent=31 // pred_region
          %226 = dma.done %s219, 768
        $region36: #{tpu_custom_call.1} parent=31 // pred_fallthru
          _
        %p227 = pneg %p47
        %p228 = pneg %p44
        %s229 = smul.u32 2, %s24
        %p230 = scmp.lt.s32.totalorder %s229, 1
        %s231 = scalar_select %p230, %s229, 1
        %s232 = smul.addr %s231, 2
        %s233 = scalar_lea.vmem %s1, %s232
        %p234 = pneg %p73
        %p235 = pneg %p70
        %s236 = sand.u32 %s88, 1
        %s237 = scalar_lea.sflag [#allocation4], %s236
        %s238 = sand.u32 %s88, 1
        %s239 = smul.addr %s238, 48
        %s240 = scalar_lea.vmem [#allocation3], %s239
        %p241 = pneg %p101
        %p242 = pneg %p98
        %p243 = pneg %p129
        %p244 = pneg %p126
        %s245 = smul.u32 32, %s24
        %p246 = scmp.lt.s32.totalorder %s23, 1
        %s247 = scalar_select %p246, %s23, 1
        %p248 = scmp.lt.s32.totalorder %s245, 31
        %s249 = scalar_select %p248, %s245, 31
        %s250 = smul.addr %s247, 32
        %s251 = sadd.s32 %s249, %s250
        %s252 = smul.addr %s251, 8
        %s253 = scalar_lea.vmem %s3, %s252
        %p254 = pneg %p157
        %p255 = pneg %p154
        %s256 = smul.u32 32, %s24
        %p257 = scmp.lt.s32.totalorder %s23, 1
        %s258 = scalar_select %p257, %s23, 1
        %p259 = scmp.lt.s32.totalorder %s256, 31
        %s260 = scalar_select %p259, %s256, 31
        %s261 = smul.addr %s258, 32
        %s262 = sadd.s32 %s260, %s261
        %s263 = smul.addr %s262, 8
        %s264 = scalar_lea.vmem %s4, %s263
        %s265 = smul.u32 2, %s24
        %p266 = scmp.lt.s32.totalorder %s265, 1
        %s267 = scalar_select %p266, %s265, 1
        %s268 = smul.addr %s267, 2
        %s269 = scalar_lea.vmem %s1, %s268
        %s270 = smul.u32 2, %s24
        %s271 = smul.u32 2, %s24
        %s272 = smul.u32 32, %s24
        %p273 = scmp.lt.s32.totalorder %s23, 1
        %s274 = scalar_select %p273, %s23, 1
        %p275 = scmp.lt.s32.totalorder %s272, 31
        %s276 = scalar_select %p275, %s272, 31
        %s277 = smul.addr %s274, 32
        %s278 = sadd.s32 %s276, %s277
        %s279 = smul.addr %s278, 8
        %s280 = scalar_lea.vmem %s3, %s279
        %s281 = smul.u32 32, %s24
        %s282 = smul.u32 32, %s24
        %p283 = scmp.lt.s32.totalorder %s23, 1
        %s284 = scalar_select %p283, %s23, 1
        %p285 = scmp.lt.s32.totalorder %s282, 31
        %s286 = scalar_select %p285, %s282, 31
        %s287 = smul.addr %s284, 32
        %s288 = sadd.s32 %s286, %s287
        %s289 = smul.addr %s288, 8
        %s290 = scalar_lea.vmem %s4, %s289
        %s291 = smul.u32 32, %s24
        %v292 = vld [vmem:[%s222] sm:$0xff]
        %v293 = vld [vmem:[%s222 + $0x8] sm:$0xff]
        %v294 = vld [vmem:[%s222 + $0x10] sm:$0xff]
        %v295 = vld [vmem:[%s222 + $0x18] sm:$0xff]
        %v296 = vld [vmem:[%s222 + $0x20] sm:$0xff]
        %v297 = vld [vmem:[%s222 + $0x28] sm:$0xff]
        %v298 = vxor.u32 %v292, 2147483648
        %v299 = vxor.u32 %v293, 2147483648
        %v300 = vxor.u32 %v294, 2147483648
        %v301 = vxor.u32 %v295, 2147483648
        %v302 = vxor.u32 %v296, 2147483648
        %v303 = vxor.u32 %v297, 2147483648
        %v304 = vmul.f32 %v298, 1.442695
        %v305 = vpow.pop %v304
        %v306 = vmul.f32 %v299, 1.442695
        %v307 = vpow.pop %v306
        %v308 = vmul.f32 %v300, 1.442695
        %v309 = vpow.pop %v308
        %v310 = vmul.f32 %v301, 1.442695
        %v311 = vpow.pop %v310
        %v312 = vmul.f32 %v302, 1.442695
        %v313 = vpow.pop %v312
        %v314 = vmul.f32 %v303, 1.442695
        %v315 = vpow.pop %v314
        %v316 = vadd.f32 %v305, 1.0
        %v317 = vadd.f32 %v307, 1.0
        %v318 = vadd.f32 %v309, 1.0
        %v319 = vadd.f32 %v311, 1.0
        %v320 = vadd.f32 %v313, 1.0
        %v321 = vadd.f32 %v315, 1.0
        %v322 = vrcp.pop %v316
        %v323 = vmul.f32 1.0, %v322
        %v324 = vrcp.pop %v317
        %v325 = vmul.f32 1.0, %v324
        %v326 = vrcp.pop %v318
        %v327 = vmul.f32 1.0, %v326
        %v328 = vrcp.pop %v319
        %v329 = vmul.f32 1.0, %v328
        %v330 = vrcp.pop %v320
        %v331 = vmul.f32 1.0, %v330
        %v332 = vrcp.pop %v321
        %v333 = vmul.f32 1.0, %v332
        %334 = vst [vmem:[#allocation2] sm:$0xff] %v323
        %335 = vst [vmem:[#allocation2 + $0x8] sm:$0xff] %v325
        %336 = vst [vmem:[#allocation2 + $0x10] sm:$0xff] %v327
        %337 = vst [vmem:[#allocation2 + $0x18] sm:$0xff] %v329
        %338 = vst [vmem:[#allocation2 + $0x20] sm:$0xff] %v331
        %339 = vst [vmem:[#allocation2 + $0x28] sm:$0xff] %v333
        %v340 = vld [vmem:[%s269] sm:$0xf]
        %v341 = vld [vmem:[%s0] sm:$0x3f]
        %v344 = vunpack.c.l.s4 1983009808
        %v345 = vunpack.c.0.s8 %v344
        %v346 = vlaneseq
        %v347 = vshrl.u32 %v346, 7
        %v348 = vsub.s32 %v345, %v347
        %v349 = vrot.slane %v340, %v348
        %v350 = vcombine.high %v349, %v349
        %v353 = vadd.f32 %v323, %v349
        %v354 = vadd.f32 %v325, %v350
        %v355 = vmul.f32 %v353, 0.0625
        %v356 = vmul.f32 %v354, 0.0625
        %357 = vst [vmem:[#allocation2] sm:$0x3] %v355
        %358 = vst [vmem:[#allocation2 + $0x8] sm:$0x3] %v356
        %v359 = vmul.f32 %v292, 1.442695
        %v360 = vpow.pop %v359
        %v361 = vmul.f32 %v293, 1.442695
        %v362 = vpow.pop %v361
        %364 = vset.pattern.permute.xlu0 0
        %365 = vperm.xlu0 %364, %v341
        %v366 = vpop.permute.xlu0 %365
        %v367 = vrot.slane %v366, 6
        %v369 = vmul.f32 %v360, %v367
        %v370 = vmul.f32 %v362, %v367
        %371 = vst [vmem:[#allocation2] sm:$0xc] %v369
        %372 = vst [vmem:[#allocation2 + $0x8] sm:$0xc] %v370
        %v373 = vadd.f32 %v327, %v349
        %v374 = vadd.f32 %v329, %v350
        %v375 = vmul.f32 %v373, 0.0625
        %v376 = vmul.f32 %v374, 0.0625
        %377 = vst [vmem:[#allocation2 + $0x10] sm:$0x3] %v375
        %378 = vst [vmem:[#allocation2 + $0x18] sm:$0x3] %v376
        %v379 = vmul.f32 %v294, 1.442695
        %v380 = vpow.pop %v379
        %v381 = vmul.f32 %v295, 1.442695
        %v382 = vpow.pop %v381
        %v384 = vmul.f32 %v380, %v366
        %v385 = vmul.f32 %v382, %v366
        %386 = vst [vmem:[#allocation2 + $0x10] sm:$0xc] %v384
        %387 = vst [vmem:[#allocation2 + $0x18] sm:$0xc] %v385
        %v388 = vadd.f32 %v331, %v349
        %v389 = vadd.f32 %v333, %v350
        %v390 = vmul.f32 %v388, 0.0625
        %v391 = vmul.f32 %v389, 0.0625
        %392 = vst [vmem:[#allocation2 + $0x20] sm:$0x3] %v390
        %393 = vst [vmem:[#allocation2 + $0x28] sm:$0x3] %v391
        %v394 = vmul.f32 %v296, 1.442695
        %v395 = vpow.pop %v394
        %v396 = vmul.f32 %v297, 1.442695
        %v397 = vpow.pop %v396
        %v398 = vrot.slane %v366, 2
        %v400 = vmul.f32 %v395, %v398
        %v401 = vmul.f32 %v397, %v398
        %402 = vst [vmem:[#allocation2 + $0x20] sm:$0xc] %v400
        %403 = vst [vmem:[#allocation2 + $0x28] sm:$0xc] %v401
        %404 = vxpose.xlu0.b32.start [1/16] %v292, 128
        %405 = vxpose.xlu0.b32.cont [2/16] %v294, 128
        %406 = vxpose.xlu0.b32.cont [3/16] %v296, 128
        %407 = vxpose.xlu0.b32.cont [4/16] 0.0, 128
        %408 = vxpose.xlu0.b32.cont [5/16] 0.0, 128
        %409 = vxpose.xlu0.b32.cont [6/16] 0.0, 128
        %410 = vxpose.xlu0.b32.cont [7/16] 0.0, 128
        %411 = vxpose.xlu0.b32.cont [8/16] 0.0, 128
        %412 = vxpose.xlu0.b32.cont [9/16] 0.0, 128
        %413 = vxpose.xlu0.b32.cont [10/16] 0.0, 128
        %414 = vxpose.xlu0.b32.cont [11/16] 0.0, 128
        %415 = vxpose.xlu0.b32.cont [12/16] 0.0, 128
        %416 = vxpose.xlu0.b32.cont [13/16] 0.0, 128
        %417 = vxpose.xlu0.b32.cont [14/16] 0.0, 128
        %418 = vxpose.xlu0.b32.cont [15/16] 0.0, 128
        %419 = vxpose.xlu0.b32.end [16/16] 0.0, 128
        %v420 = vpop.trf.xlu0
        %v421 = vpop.trf.xlu0
        %v422 = vpop.trf.xlu0
        %v423 = vpop.trf.xlu0
        %v424 = vpop.trf.xlu0
        %v425 = vpop.trf.xlu0
        %v426 = vpop.trf.xlu0
        %v427 = vpop.trf.xlu0
        %v428 = vpop.trf.xlu0
        %v429 = vpop.trf.xlu0
        %v430 = vpop.trf.xlu0
        %v431 = vpop.trf.xlu0
        %v432 = vpop.trf.xlu0
        %v433 = vpop.trf.xlu0
        %v434 = vpop.trf.xlu0
        %v435 = vpop.trf.xlu0
        %436 = vxpose.xlu0.b32.start [1/16] %v293, 128
        %437 = vxpose.xlu0.b32.cont [2/16] %v295, 128
        %438 = vxpose.xlu0.b32.cont [3/16] %v297, 128
        %439 = vxpose.xlu0.b32.cont [4/16] 0.0, 128
        %440 = vxpose.xlu0.b32.cont [5/16] 0.0, 128
        %441 = vxpose.xlu0.b32.cont [6/16] 0.0, 128
        %442 = vxpose.xlu0.b32.cont [7/16] 0.0, 128
        %443 = vxpose.xlu0.b32.cont [8/16] 0.0, 128
        %444 = vxpose.xlu0.b32.cont [9/16] 0.0, 128
        %445 = vxpose.xlu0.b32.cont [10/16] 0.0, 128
        %446 = vxpose.xlu0.b32.cont [11/16] 0.0, 128
        %447 = vxpose.xlu0.b32.cont [12/16] 0.0, 128
        %448 = vxpose.xlu0.b32.cont [13/16] 0.0, 128
        %449 = vxpose.xlu0.b32.cont [14/16] 0.0, 128
        %450 = vxpose.xlu0.b32.cont [15/16] 0.0, 128
        %451 = vxpose.xlu0.b32.end [16/16] 0.0, 128
        %v452 = vpop.trf.xlu0
        %v453 = vpop.trf.xlu0
        %v454 = vpop.trf.xlu0
        %v455 = vpop.trf.xlu0
        %v456 = vpop.trf.xlu0
        %v457 = vpop.trf.xlu0
        %v458 = vpop.trf.xlu0
        %v459 = vpop.trf.xlu0
        %v460 = vpop.trf.xlu0
        %v461 = vpop.trf.xlu0
        %v462 = vpop.trf.xlu0
        %v463 = vpop.trf.xlu0
        %v464 = vpop.trf.xlu0
        %v465 = vpop.trf.xlu0
        %v466 = vpop.trf.xlu0
        %v467 = vpop.trf.xlu0
        %vm468 = vcmask 195584
        %469 = vst.msk [vmem:[%s280] sm:$0xff] %vm468, %v420
        %470 = vst.msk [vmem:[%s280 + $0x8] sm:$0xff] %vm468, %v421
        %471 = vst.msk [vmem:[%s280 + $0x10] sm:$0xff] %vm468, %v422
        %472 = vst.msk [vmem:[%s280 + $0x18] sm:$0xff] %vm468, %v423
        %473 = vst.msk [vmem:[%s280 + $0x20] sm:$0xff] %vm468, %v424
        %474 = vst.msk [vmem:[%s280 + $0x28] sm:$0xff] %vm468, %v425
        %475 = vst.msk [vmem:[%s280 + $0x30] sm:$0xff] %vm468, %v426
        %476 = vst.msk [vmem:[%s280 + $0x38] sm:$0xff] %vm468, %v427
        %477 = vst.msk [vmem:[%s280 + $0x40] sm:$0xff] %vm468, %v428
        %478 = vst.msk [vmem:[%s280 + $0x48] sm:$0xff] %vm468, %v429
        %479 = vst.msk [vmem:[%s280 + $0x50] sm:$0xff] %vm468, %v430
        %480 = vst.msk [vmem:[%s280 + $0x58] sm:$0xff] %vm468, %v431
        %481 = vst.msk [vmem:[%s280 + $0x60] sm:$0xff] %vm468, %v432
        %482 = vst.msk [vmem:[%s280 + $0x68] sm:$0xff] %vm468, %v433
        %483 = vst.msk [vmem:[%s280 + $0x70] sm:$0xff] %vm468, %v434
        %484 = vst.msk [vmem:[%s280 + $0x78] sm:$0xff] %vm468, %v435
        %485 = vst.msk [vmem:[%s280 + $0x80] sm:$0xff] %vm468, %v452
        %486 = vst.msk [vmem:[%s280 + $0x88] sm:$0xff] %vm468, %v453
        %487 = vst.msk [vmem:[%s280 + $0x90] sm:$0xff] %vm468, %v454
        %488 = vst.msk [vmem:[%s280 + $0x98] sm:$0xff] %vm468, %v455
        %489 = vst.msk [vmem:[%s280 + $0xa0] sm:$0xff] %vm468, %v456
        %490 = vst.msk [vmem:[%s280 + $0xa8] sm:$0xff] %vm468, %v457
        %491 = vst.msk [vmem:[%s280 + $0xb0] sm:$0xff] %vm468, %v458
        %492 = vst.msk [vmem:[%s280 + $0xb8] sm:$0xff] %vm468, %v459
        %493 = vst.msk [vmem:[%s280 + $0xc0] sm:$0xff] %vm468, %v460
        %494 = vst.msk [vmem:[%s280 + $0xc8] sm:$0xff] %vm468, %v461
        %495 = vst.msk [vmem:[%s280 + $0xd0] sm:$0xff] %vm468, %v462
        %496 = vst.msk [vmem:[%s280 + $0xd8] sm:$0xff] %vm468, %v463
        %497 = vst.msk [vmem:[%s280 + $0xe0] sm:$0xff] %vm468, %v464
        %498 = vst.msk [vmem:[%s280 + $0xe8] sm:$0xff] %vm468, %v465
        %499 = vst.msk [vmem:[%s280 + $0xf0] sm:$0xff] %vm468, %v466
        %500 = vst.msk [vmem:[%s280 + $0xf8] sm:$0xff] %vm468, %v467
        %v501 = vld [vmem:[#allocation2] sm:$0xff]
        %v502 = vld [vmem:[#allocation2 + $0x8] sm:$0xff]
        %v503 = vld [vmem:[#allocation2 + $0x10] sm:$0xff]
        %v504 = vld [vmem:[#allocation2 + $0x18] sm:$0xff]
        %v505 = vld [vmem:[#allocation2 + $0x20] sm:$0xff]
        %v506 = vld [vmem:[#allocation2 + $0x28] sm:$0xff]
        %507 = vxpose.xlu0.b32.start [1/16] %v501, 128
        %508 = vxpose.xlu0.b32.cont [2/16] %v503, 128
        %509 = vxpose.xlu0.b32.cont [3/16] %v505, 128
        %510 = vxpose.xlu0.b32.cont [4/16] 0.0, 128
        %511 = vxpose.xlu0.b32.cont [5/16] 0.0, 128
        %512 = vxpose.xlu0.b32.cont [6/16] 0.0, 128
        %513 = vxpose.xlu0.b32.cont [7/16] 0.0, 128
        %514 = vxpose.xlu0.b32.cont [8/16] 0.0, 128
        %515 = vxpose.xlu0.b32.cont [9/16] 0.0, 128
        %516 = vxpose.xlu0.b32.cont [10/16] 0.0, 128
        %517 = vxpose.xlu0.b32.cont [11/16] 0.0, 128
        %518 = vxpose.xlu0.b32.cont [12/16] 0.0, 128
        %519 = vxpose.xlu0.b32.cont [13/16] 0.0, 128
        %520 = vxpose.xlu0.b32.cont [14/16] 0.0, 128
        %521 = vxpose.xlu0.b32.cont [15/16] 0.0, 128
        %522 = vxpose.xlu0.b32.end [16/16] 0.0, 128
        %v523 = vpop.trf.xlu0
        %v524 = vpop.trf.xlu0
        %v525 = vpop.trf.xlu0
        %v526 = vpop.trf.xlu0
        %v527 = vpop.trf.xlu0
        %v528 = vpop.trf.xlu0
        %v529 = vpop.trf.xlu0
        %v530 = vpop.trf.xlu0
        %v531 = vpop.trf.xlu0
        %v532 = vpop.trf.xlu0
        %v533 = vpop.trf.xlu0
        %v534 = vpop.trf.xlu0
        %v535 = vpop.trf.xlu0
        %v536 = vpop.trf.xlu0
        %v537 = vpop.trf.xlu0
        %v538 = vpop.trf.xlu0
        %539 = vxpose.xlu0.b32.start [1/16] %v502, 128
        %540 = vxpose.xlu0.b32.cont [2/16] %v504, 128
        %541 = vxpose.xlu0.b32.cont [3/16] %v506, 128
        %542 = vxpose.xlu0.b32.cont [4/16] 0.0, 128
        %543 = vxpose.xlu0.b32.cont [5/16] 0.0, 128
        %544 = vxpose.xlu0.b32.cont [6/16] 0.0, 128
        %545 = vxpose.xlu0.b32.cont [7/16] 0.0, 128
        %546 = vxpose.xlu0.b32.cont [8/16] 0.0, 128
        %547 = vxpose.xlu0.b32.cont [9/16] 0.0, 128
        %548 = vxpose.xlu0.b32.cont [10/16] 0.0, 128
        %549 = vxpose.xlu0.b32.cont [11/16] 0.0, 128
        %550 = vxpose.xlu0.b32.cont [12/16] 0.0, 128
        %551 = vxpose.xlu0.b32.cont [13/16] 0.0, 128
        %552 = vxpose.xlu0.b32.cont [14/16] 0.0, 128
        %553 = vxpose.xlu0.b32.cont [15/16] 0.0, 128
        %554 = vxpose.xlu0.b32.end [16/16] 0.0, 128
        %v555 = vpop.trf.xlu0
        %v556 = vpop.trf.xlu0
        %v557 = vpop.trf.xlu0
        %v558 = vpop.trf.xlu0
        %v559 = vpop.trf.xlu0
        %v560 = vpop.trf.xlu0
        %v561 = vpop.trf.xlu0
        %v562 = vpop.trf.xlu0
        %v563 = vpop.trf.xlu0
        %v564 = vpop.trf.xlu0
        %v565 = vpop.trf.xlu0
        %v566 = vpop.trf.xlu0
        %v567 = vpop.trf.xlu0
        %v568 = vpop.trf.xlu0
        %v569 = vpop.trf.xlu0
        %v570 = vpop.trf.xlu0
        %571 = vst.msk [vmem:[%s290] sm:$0xff] %vm468, %v523
        %572 = vst.msk [vmem:[%s290 + $0x8] sm:$0xff] %vm468, %v524
        %573 = vst.msk [vmem:[%s290 + $0x10] sm:$0xff] %vm468, %v525
        %574 = vst.msk [vmem:[%s290 + $0x18] sm:$0xff] %vm468, %v526
        %575 = vst.msk [vmem:[%s290 + $0x20] sm:$0xff] %vm468, %v527
        %576 = vst.msk [vmem:[%s290 + $0x28] sm:$0xff] %vm468, %v528
        %577 = vst.msk [vmem:[%s290 + $0x30] sm:$0xff] %vm468, %v529
        %578 = vst.msk [vmem:[%s290 + $0x38] sm:$0xff] %vm468, %v530
        %579 = vst.msk [vmem:[%s290 + $0x40] sm:$0xff] %vm468, %v531
        %580 = vst.msk [vmem:[%s290 + $0x48] sm:$0xff] %vm468, %v532
        %581 = vst.msk [vmem:[%s290 + $0x50] sm:$0xff] %vm468, %v533
        %582 = vst.msk [vmem:[%s290 + $0x58] sm:$0xff] %vm468, %v534
        %583 = vst.msk [vmem:[%s290 + $0x60] sm:$0xff] %vm468, %v535
        %584 = vst.msk [vmem:[%s290 + $0x68] sm:$0xff] %vm468, %v536
        %585 = vst.msk [vmem:[%s290 + $0x70] sm:$0xff] %vm468, %v537
        %586 = vst.msk [vmem:[%s290 + $0x78] sm:$0xff] %vm468, %v538
        %587 = vst.msk [vmem:[%s290 + $0x80] sm:$0xff] %vm468, %v555
        %588 = vst.msk [vmem:[%s290 + $0x88] sm:$0xff] %vm468, %v556
        %589 = vst.msk [vmem:[%s290 + $0x90] sm:$0xff] %vm468, %v557
        %590 = vst.msk [vmem:[%s290 + $0x98] sm:$0xff] %vm468, %v558
        %591 = vst.msk [vmem:[%s290 + $0xa0] sm:$0xff] %vm468, %v559
        %592 = vst.msk [vmem:[%s290 + $0xa8] sm:$0xff] %vm468, %v560
        %593 = vst.msk [vmem:[%s290 + $0xb0] sm:$0xff] %vm468, %v561
        %594 = vst.msk [vmem:[%s290 + $0xb8] sm:$0xff] %vm468, %v562
        %595 = vst.msk [vmem:[%s290 + $0xc0] sm:$0xff] %vm468, %v563
        %596 = vst.msk [vmem:[%s290 + $0xc8] sm:$0xff] %vm468, %v564
        %597 = vst.msk [vmem:[%s290 + $0xd0] sm:$0xff] %vm468, %v565
        %598 = vst.msk [vmem:[%s290 + $0xd8] sm:$0xff] %vm468, %v566
        %599 = vst.msk [vmem:[%s290 + $0xe0] sm:$0xff] %vm468, %v567
        %600 = vst.msk [vmem:[%s290 + $0xe8] sm:$0xff] %vm468, %v568
        %601 = vst.msk [vmem:[%s290 + $0xf0] sm:$0xff] %vm468, %v569
        %602 = vst.msk [vmem:[%s290 + $0xf8] sm:$0xff] %vm468, %v570
        %s603 = smul.u32 32, %s24
        %p604 = scmp.lt.s32.totalorder %s23, 1
        %s605 = scalar_select %p604, %s23, 1
        %p606 = scmp.lt.s32.totalorder %s603, 31
        %s607 = scalar_select %p606, %s603, 31
        %s608 = smul.addr %s605, 32
        %s609 = sadd.s32 %s607, %s608
        %s610 = smul.addr %s609, 8
        %s611 = scalar_lea.vmem %s3, %s610
        %s612 = smul.u32 32, %s24
        %p613 = scmp.lt.s32.totalorder %s23, 1
        %s614 = scalar_select %p613, %s23, 1
        %p615 = scmp.lt.s32.totalorder %s612, 31
        %s616 = scalar_select %p615, %s612, 31
        %s617 = smul.addr %s614, 32
        %s618 = sadd.s32 %s616, %s617
        %s619 = smul.addr %s618, 8
        %s620 = scalar_lea.vmem %s4, %s619
        // Predicated region
        $region37: #{tpu_custom_call.1} parent=31 // pred_check
          %p621 = pneg %p126
        $region38: #{tpu_custom_call.1} parent=31 // pred_check_branch
          %623 = sbr.rel (%p621) target = $region40
        $region39: #{tpu_custom_call.1} parent=31 // pred_region
          %s624 = smul.u32 32, %s24
        $region40: #{tpu_custom_call.1} parent=31 // pred_fallthru
          _
        // Predicated region
        $region41: #{tpu_custom_call.1} parent=31 // pred_check
          %p625 = pneg %p154
        $region42: #{tpu_custom_call.1} parent=31 // pred_check_branch
          %627 = sbr.rel (%p625) target = $region44
        $region43: #{tpu_custom_call.1} parent=31 // pred_region
          %s628 = smul.u32 32, %s24
        $region44: #{tpu_custom_call.1} parent=31 // pred_fallthru
          _
      $region32: #{tpu_custom_call.1} parent=5 // pred_fallthru
        _
      %p629 = scmp.le.s32.totalorder 2, %s14
      // Predicated region
      $region45: #{tpu_custom_call.1} parent=5 // pred_check
        %p630 = pneg %p629
      $region46: #{tpu_custom_call.1} parent=5 // pred_check_branch
        %632 = sbr.rel (%p630) target = $region48
      $region47: #{tpu_custom_call.1} parent=5 // pred_region
        %s633 = ssub.s32 %s14, 2
        // Predicated region
        $region49: #{tpu_custom_call.1} parent=47 // pred_check
          %p634 = pneg %p132
        $region50: #{tpu_custom_call.1} parent=47 // pred_check_branch
          %636 = sbr.rel (%p634) target = $region52
        $region51: #{tpu_custom_call.1} parent=47 // pred_region
          %s637 = smul.u32 32, %s26
          %p638 = scmp.lt.s32.totalorder %s25, 1
          %s639 = scalar_select %p638, %s25, 1
          %p640 = scmp.lt.s32.totalorder %s637, 31
          %s641 = scalar_select %p640, %s637, 31
          %s642 = smul.addr %s639, 32
          %s643 = sadd.s32 %s641, %s642
          %s644 = smul.addr %s643, 8
          %s645 = scalar_lea.vmem %s3, %s644
        $region52: #{tpu_custom_call.1} parent=47 // pred_fallthru
          _
        // Predicated region
        $region53: #{tpu_custom_call.1} parent=47 // pred_check
          %p646 = pneg %p160
        $region54: #{tpu_custom_call.1} parent=47 // pred_check_branch
          %648 = sbr.rel (%p646) target = $region56
        $region55: #{tpu_custom_call.1} parent=47 // pred_region
          %s649 = smul.u32 32, %s26
          %p650 = scmp.lt.s32.totalorder %s25, 1
          %s651 = scalar_select %p650, %s25, 1
          %p652 = scmp.lt.s32.totalorder %s649, 31
          %s653 = scalar_select %p652, %s649, 31
          %s654 = smul.addr %s651, 32
          %s655 = sadd.s32 %s653, %s654
          %s656 = smul.addr %s655, 8
          %s657 = scalar_lea.vmem %s4, %s656
        $region56: #{tpu_custom_call.1} parent=47 // pred_fallthru
          _
      $region48: #{tpu_custom_call.1} parent=5 // pred_fallthru
        _
    $region6: #{tpu_custom_call.1} parent=1 // loop_footer
      %s18 = sadd.s32 1, %s14
    $region7: #{tpu_custom_call.1} parent=1 // loop_footer_branch
      %13 = sbr.rel target = $region3
    $region8: #{tpu_custom_call.1} parent=1 // loop_exit
      _
    %658 = vsyncpa [#allocation4], 1
    %s659 = scalar_lea.sflag [#allocation4], 1
    %660 = vsyncpa %s659, 1

</llo_original>
